<compile_context>
chip_gen: v5e
topology: v5e:2x2
jax: 0.10.0
libtpu: 0.0.40
codegen_flags: <defaults>
</compile_context>

<pallas_src>
import math
from functools import partial

import jax
import jax.numpy as jnp
from jax.experimental import pallas as pl
from jax.experimental.pallas import tpu as pltpu

NEG_INF = -1e9
LN_EPS = 1e-5
ROW_ALIGN = 16          # bf16 sublane packing -> keep row tiles multiples of 16


# --------------------------------------------------------------------------
# Per-generation budgets
# --------------------------------------------------------------------------

def _detect_tpu_config():
    """Returns (mxu_align, vmem_limit_bytes, ffn_resident_weight_limit)."""
    kind = ""
    try:
        kind = jax.devices()[0].device_kind.lower()
    except Exception:
        pass
    vmem_cap = None
    try:
        vmem_cap = int(pltpu.get_tpu_info().vmem_capacity_bytes)
    except Exception:
        vmem_cap = None
    if vmem_cap is None:
        vmem_cap = 64 * 1024 * 1024 if "v7" in kind else 128 * 1024 * 1024
    # v2-v5 MXU is 128-wide; v6e/v7x are 256-wide.
    old_gen = any(g in kind for g in ("v2", "v3", "v4", "v5"))
    mxu_align = 128 if old_gen else 256
    if vmem_cap <= 64 * 1024 * 1024:          # v7x: 64 MiB physical VMEM
        vmem_limit = 32 * 1024 * 1024
        ffn_resident_limit = 8 * 1024 * 1024
    else:                                     # v5e / v6e: 128 MiB physical VMEM
        vmem_limit = 48 * 1024 * 1024
        ffn_resident_limit = 16 * 1024 * 1024
    return mxu_align, vmem_limit, ffn_resident_limit


MXU_ALIGN, VMEM_LIMIT, FFN_RESIDENT_LIMIT = _detect_tpu_config()


def _cparams(*sem):
    return pltpu.CompilerParams(dimension_semantics=sem,
                                vmem_limit_bytes=VMEM_LIMIT)


# --------------------------------------------------------------------------
# Tiling helpers
# --------------------------------------------------------------------------

def _round_up(x, m):
    return ((x + m - 1) // m) * m


def _choose_row_tile(M, pref):
    """Row (sublane) tile: returns (tm, padded_M); tm is a multiple of 16."""
    Mp = _round_up(M, ROW_ALIGN)
    if Mp <= pref:
        return Mp, Mp
    t = (pref // ROW_ALIGN) * ROW_ALIGN
    while t >= ROW_ALIGN:
        if Mp % t == 0:
            return t, Mp
        t -= ROW_ALIGN
    return Mp, Mp   # unreachable (ROW_ALIGN always divides Mp)


def _pick_tile(dim, pref, align):
    """Largest tile <= pref that is a multiple of `align` and divides `dim`;
    falls back to the full dim (always a legal block) when none exists."""
    if dim <= pref:
        return dim
    t = (pref // align) * align
    while t >= align:
        if dim % t == 0:
            return t
        t -= align
    return dim


def _pad_rows(x2d, Mp):
    M = x2d.shape[0]
    if Mp == M:
        return x2d
    return jnp.pad(x2d, ((0, Mp - M), (0, 0)))


# --------------------------------------------------------------------------
# Tiled linear kernel: y = act(x @ w + b), bf16 operands, f32 accumulation
# --------------------------------------------------------------------------

def _linear_kernel(x_ref, w_ref, b_ref, o_ref, acc_ref, *, activation):
    k = pl.program_id(2)

    @pl.when(k == 0)
    def _():
        acc_ref[...] = jnp.zeros_like(acc_ref)

    acc_ref[...] += jnp.dot(x_ref[...], w_ref[...],
                            preferred_element_type=jnp.float32)

    @pl.when(k == pl.num_programs(2) - 1)
    def _():
        y = acc_ref[...] + b_ref[...]
        if activation == "gelu":
            y = jax.nn.gelu(y, approximate=False)   # exact erf GELU (PyTorch default)
        o_ref[...] = y.astype(o_ref.dtype)


def linear(x2d, w_t, b, activation=None, out_dtype=jnp.bfloat16):
    # x2d: (M, K) bf16 activations, w_t: (K, N) bf16 (pre-transposed), b: (N,) f32
    x2d = x2d.astype(jnp.bfloat16)
    M, K = x2d.shape
    K2, N = w_t.shape
    assert K == K2
    tm, Mp = _choose_row_tile(M, 512)
    x2d = _pad_rows(x2d, Mp)
    tn = _pick_tile(N, 512, MXU_ALIGN)
    tk = _pick_tile(K, 512, MXU_ALIGN)
    grid = (Mp // tm, N // tn, K // tk)
    out = pl.pallas_call(
        partial(_linear_kernel, activation=activation),
        out_shape=jax.ShapeDtypeStruct((Mp, N), out_dtype),
        grid=grid,
        in_specs=[
            pl.BlockSpec((tm, tk), lambda i, j, k: (i, k)),
            pl.BlockSpec((tk, tn), lambda i, j, k: (k, j)),
            pl.BlockSpec((1, tn), lambda i, j, k: (0, j)),
        ],
        out_specs=pl.BlockSpec((tm, tn), lambda i, j, k: (i, j)),
        scratch_shapes=[pltpu.VMEM((tm, tn), jnp.float32)],
        compiler_params=_cparams("parallel", "parallel", "arbitrary"),
    )(x2d, w_t, b.reshape(1, N))
    return out[:M] if Mp != M else out


# --------------------------------------------------------------------------
# Fused residual-add + LayerNorm (used by the FFN fallback path)
# --------------------------------------------------------------------------

def _add_ln_kernel(x_ref, y_ref, g_ref, b_ref, o_ref):
    x = x_ref[...].astype(jnp.float32) + y_ref[...].astype(jnp.float32)
    mean = jnp.mean(x, axis=-1, keepdims=True)
    var = jnp.mean(jnp.square(x - mean), axis=-1, keepdims=True)
    y = (x - mean) * jax.lax.rsqrt(var + LN_EPS)
    o_ref[...] = (y * g_ref[...] + b_ref[...]).astype(o_ref.dtype)


def add_layernorm(x2d, y2d, gamma, beta):
    M, E = x2d.shape
    tm, Mp = _choose_row_tile(M, 512)
    x2d = _pad_rows(x2d.astype(jnp.bfloat16), Mp)
    y2d = _pad_rows(y2d.astype(jnp.bfloat16), Mp)
    out = pl.pallas_call(
        _add_ln_kernel,
        out_shape=jax.ShapeDtypeStruct((Mp, E), jnp.bfloat16),
        grid=(Mp // tm,),
        in_specs=[
            pl.BlockSpec((tm, E), lambda i: (i, 0)),
            pl.BlockSpec((tm, E), lambda i: (i, 0)),
            pl.BlockSpec((1, E), lambda i: (0, 0)),
            pl.BlockSpec((1, E), lambda i: (0, 0)),
        ],
        out_specs=pl.BlockSpec((tm, E), lambda i: (i, 0)),
        compiler_params=_cparams("parallel"),
    )(x2d, y2d, gamma.reshape(1, E), beta.reshape(1, E))
    return out[:M] if Mp != M else out


# --------------------------------------------------------------------------
# Fused attention out-projection + residual + LayerNorm:  LN( r + a @ w + b )
# --------------------------------------------------------------------------

def _proj_add_ln_kernel(a_ref, r_ref, w_ref, b_ref, g_ref, be_ref, o_ref):
    y = jnp.dot(a_ref[...], w_ref[...], preferred_element_type=jnp.float32)
    y = y + b_ref[...] + r_ref[...].astype(jnp.float32)
    mean = jnp.mean(y, axis=-1, keepdims=True)
    var = jnp.mean(jnp.square(y - mean), axis=-1, keepdims=True)
    yn = (y - mean) * jax.lax.rsqrt(var + LN_EPS)
    o_ref[...] = (yn * g_ref[...] + be_ref[...]).astype(o_ref.dtype)


def proj_residual_ln(a2d, r2d, w_t, b, gamma, beta):
    # a2d: attention core output (M, E) bf16; r2d: residual (M, E) bf16
    M, E = r2d.shape
    tm, Mp = _choose_row_tile(M, 512)
    a2d = _pad_rows(a2d.astype(jnp.bfloat16), Mp)
    r2d = _pad_rows(r2d.astype(jnp.bfloat16), Mp)
    out = pl.pallas_call(
        _proj_add_ln_kernel,
        out_shape=jax.ShapeDtypeStruct((Mp, E), jnp.bfloat16),
        grid=(Mp // tm,),
        in_specs=[
            pl.BlockSpec((tm, E), lambda i: (i, 0)),
            pl.BlockSpec((tm, E), lambda i: (i, 0)),
            # TODO(synk): pipeline_mode=pl.Buffered(1) for this invariant weight
            pl.BlockSpec((E, E), lambda i: (0, 0)),
            pl.BlockSpec((1, E), lambda i: (0, 0)),
            pl.BlockSpec((1, E), lambda i: (0, 0)),
            pl.BlockSpec((1, E), lambda i: (0, 0)),
        ],
        out_specs=pl.BlockSpec((tm, E), lambda i: (i, 0)),
        compiler_params=_cparams("parallel"),
    )(a2d, r2d, w_t, b.reshape(1, E), gamma.reshape(1, E), beta.reshape(1, E))
    return out[:M] if Mp != M else out


# --------------------------------------------------------------------------
# Fused FFN: LN(x + ff2(gelu(ff1(x))))
# --------------------------------------------------------------------------

def _ffn_kernel(x_ref, w1_ref, b1_ref, w2_ref, b2_ref, g_ref, be_ref, o_ref):
    x = x_ref[...]                                              # bf16 (tm, E)
    h = jnp.dot(x, w1_ref[...], preferred_element_type=jnp.float32) + b1_ref[...]
    h = jax.nn.gelu(h, approximate=False)
    y = jnp.dot(h.astype(jnp.bfloat16), w2_ref[...],
                preferred_element_type=jnp.float32) + b2_ref[...]
    y = y + x.astype(jnp.float32)                               # residual (f32)
    mean = jnp.mean(y, axis=-1, keepdims=True)
    var = jnp.mean(jnp.square(y - mean), axis=-1, keepdims=True)
    yn = (y - mean) * jax.lax.rsqrt(var + LN_EPS)
    o_ref[...] = (yn * g_ref[...] + be_ref[...]).astype(o_ref.dtype)


def ffn_residual_ln(x2d, w1, b1, w2, b2, gamma, beta):
    M, E = x2d.shape
    H = w1.shape[1]
    if (E * H + H * E) * 2 > FFN_RESIDENT_LIMIT:
        # TODO(synk): K-tile the FFN weights inside one kernel for very large
        # hidden sizes; for now fall back to tiled linears + fused add+LN.
        h = linear(x2d, w1, b1, activation="gelu")
        y = linear(h, w2, b2)
        return add_layernorm(x2d, y, gamma, beta)
    tm, Mp = _choose_row_tile(M, 256)
    xp = _pad_rows(x2d.astype(jnp.bfloat16), Mp)
    out = pl.pallas_call(
        _ffn_kernel,
        out_shape=jax.ShapeDtypeStruct((Mp, E), jnp.bfloat16),
        grid=(Mp // tm,),
        in_specs=[
            pl.BlockSpec((tm, E), lambda i: (i, 0)),
            # TODO(synk): pipeline_mode=pl.Buffered(1) for these invariant weights
            pl.BlockSpec((E, H), lambda i: (0, 0)),
            pl.BlockSpec((1, H), lambda i: (0, 0)),
            pl.BlockSpec((H, E), lambda i: (0, 0)),
            pl.BlockSpec((1, E), lambda i: (0, 0)),
            pl.BlockSpec((1, E), lambda i: (0, 0)),
            pl.BlockSpec((1, E), lambda i: (0, 0)),
        ],
        out_specs=pl.BlockSpec((tm, E), lambda i: (i, 0)),
        compiler_params=_cparams("parallel"),
    )(xp, w1, b1.reshape(1, H), w2, b2.reshape(1, E),
      gamma.reshape(1, E), beta.reshape(1, E))
    return out[:M] if Mp != M else out


# --------------------------------------------------------------------------
# Attention cores: one grid step per batch, all heads batched, bf16 in/out
# --------------------------------------------------------------------------

def _split_heads(x, nhead, d):
    # (T, E) -> (nhead, T, d) built from per-head static lane slices stacked
    # along a new leading (major) axis.
    return jnp.stack([x[:, h * d:(h + 1) * d] for h in range(nhead)], axis=0)


def _attend_store(q, k, v, bias, nhead, o_ref):
    # q: (Tq, E) bf16 (1/sqrt(head_dim) already folded into the Q projection),
    # k/v: (Tk, E) bf16, bias: (Tq, Tk) or (1, Tk) f32 additive.
    Tq, E = q.shape
    d = E // nhead
    q3 = _split_heads(q, nhead, d)                         # (h, Tq, d)
    k3 = _split_heads(k, nhead, d)                         # (h, Tk, d)
    v3 = _split_heads(v, nhead, d)                         # (h, Tk, d)
    s = jnp.einsum("hqd,hkd->hqk", q3, k3,
                   preferred_element_type=jnp.float32)     # batched QK^T
    s = s + bias[None]                                     # broadcast over heads
    m = jnp.max(s, axis=-1, keepdims=True)
    p = jnp.exp(s - m)
    denom = jnp.sum(p, axis=-1, keepdims=True)
    o = jnp.einsum("hqk,hkd->hqd", p.astype(jnp.bfloat16), v3,
                   preferred_element_type=jnp.float32)     # batched PV
    o = o * pl.reciprocal(denom, approx=True)              # normalize AFTER PV
    for h in range(nhead):                                 # sliced stores, no lane concat
        o_ref[0, :, h * d:(h + 1) * d] = o[h].astype(o_ref.dtype)


def _self_attn_kernel(qkv_ref, bias_ref, o_ref, *, nhead, E):
    qkv = qkv_ref[0]                                       # (T, 3E) bf16
    q, k, v = qkv[:, :E], qkv[:, E:2 * E], qkv[:, 2 * E:]
    T = q.shape[0]
    row = jax.lax.broadcasted_iota(jnp.int32, (T, T), 0)
    col = jax.lax.broadcasted_iota(jnp.int32, (T, T), 1)
    bias = bias_ref[0] + jnp.where(col <= row, 0.0, NEG_INF)   # causal + key-pad
    _attend_store(q, k, v, bias, nhead, o_ref)


def _cross_attn_kernel(q_ref, kv_ref, bias_ref, o_ref, *, nhead, E):
    q = q_ref[0]                                           # (T, E) bf16
    kv = kv_ref[0]                                         # (S, 2E) bf16
    _attend_store(q, kv[:, :E], kv[:, E:], bias_ref[0], nhead, o_ref)


# TODO(synk): flash-style query/key tiling for long sequences; this model's
# sequence is bounded by the positional-encoding max_len (100), so per-batch
# blocks are tiny and grid=(B,) keeps the pipeline simple.
def self_attention_core(qkv, key_bias, nhead):
    # qkv: (B, T, 3E) bf16 fused projection, key_bias: (B, 1, T) f32 additive
    B, T, E3 = qkv.shape
    E = E3 // 3
    return pl.pallas_call(
        partial(_self_attn_kernel, nhead=nhead, E=E),
        out_shape=jax.ShapeDtypeStruct((B, T, E), jnp.bfloat16),
        grid=(B,),
        in_specs=[
            pl.BlockSpec((1, T, E3), lambda b: (b, 0, 0)),
            pl.BlockSpec((1, 1, T), lambda b: (b, 0, 0)),
        ],
        out_specs=pl.BlockSpec((1, T, E), lambda b: (b, 0, 0)),
        compiler_params=_cparams("parallel"),
    )(qkv, key_bias)


def cross_attention_core(q, kv, key_bias, nhead):
    # q: (B, T, E) bf16, kv: (B, S, 2E) bf16, key_bias: (B, 1, S) f32
    B, T, E = q.shape
    S = kv.shape[1]
    return pl.pallas_call(
        partial(_cross_attn_kernel, nhead=nhead, E=E),
        out_shape=jax.ShapeDtypeStruct((B, T, E), jnp.bfloat16),
        grid=(B,),
        in_specs=[
            pl.BlockSpec((1, T, E), lambda b: (b, 0, 0)),
            pl.BlockSpec((1, S, 2 * E), lambda b: (b, 0, 0)),
            pl.BlockSpec((1, 1, S), lambda b: (b, 0, 0)),
        ],
        out_specs=pl.BlockSpec((1, T, E), lambda b: (b, 0, 0)),
        compiler_params=_cparams("parallel"),
    )(q, kv, key_bias)


# --------------------------------------------------------------------------
# Transformer decoder building blocks
# --------------------------------------------------------------------------

def decoder_layer(x, mem_z, p, tgt_key_bias, mem_key_bias, nhead):
    # PyTorch TransformerDecoderLayer (norm_first=False), dropout = identity
    B, T, E = x.shape
    S = mem_z.shape[1]
    x2 = x.reshape(B * T, E)

    # --- self-attention sublayer ---
    qkv = linear(x2, p["sa_qkv_w"], p["sa_qkv_b"])                       # (BT, 3E) bf16
    sa = self_attention_core(qkv.reshape(B, T, 3 * E), tgt_key_bias, nhead)
    x2 = proj_residual_ln(sa.reshape(B * T, E), x2,
                          p["sa_out_w"], p["sa_out_b"], p["ln1_w"], p["ln1_b"])

    # --- cross-attention sublayer ---
    q = linear(x2, p["ca_q_w"], p["ca_q_b"])                             # (BT, E) bf16
    kv = linear(mem_z.reshape(B * S, E), p["ca_kv_w"], p["ca_kv_b"])     # (BS, 2E) bf16
    ca = cross_attention_core(q.reshape(B, T, E), kv.reshape(B, S, 2 * E),
                              mem_key_bias, nhead)
    x2 = proj_residual_ln(ca.reshape(B * T, E), x2,
                          p["ca_out_w"], p["ca_out_b"], p["ln2_w"], p["ln2_b"])

    # --- feed-forward sublayer ---
    x2 = ffn_residual_ln(x2, p["ff1_w"], p["ff1_b"], p["ff2_w"], p["ff2_b"],
                         p["ln3_w"], p["ln3_b"])
    return x2.reshape(B, T, E)


def vae_transformer_decoder_forward(params, words, enc_mem, enc_mem_lens,
                                    caps_padding_mask, z, nhead):
    B, T = words.shape
    E = params["word_emb"].shape[1]
    S = enc_mem.shape[1]

    # batch-major layout: memory = [enc_mem ; z] along the sequence axis
    mem_z = jnp.concatenate([enc_mem, z], axis=1).astype(jnp.bfloat16)   # (B, S+T, E)

    embed = params["word_emb"][words] * math.sqrt(E)                     # (B, T, E)
    embed = embed + params["pe"][:T][None, :, :]                         # positional enc.
    # TODO(synk): dropoutlayer / pos_encoder.dropout are eval-mode identity.

    # additive key-padding biases, one row per batch (shared by all heads)
    tgt_key_bias = jnp.where(caps_padding_mask, NEG_INF, 0.0).astype(jnp.float32)
    tgt_key_bias = tgt_key_bias[:, None, :]                              # (B, 1, T)
    mem_pad = jnp.arange(S)[None, :] >= enc_mem_lens[:, None]            # True = padded
    memz_pad = jnp.concatenate([mem_pad, caps_padding_mask], axis=1)
    mem_key_bias = jnp.where(memz_pad, NEG_INF, 0.0).astype(jnp.float32)[:, None, :]

    x = embed.astype(jnp.bfloat16)
    for lp in params["layers"]:
        x = decoder_layer(x, mem_z, lp, tgt_key_bias, mem_key_bias, nhead)

    last = x[:, -1, :]                                                   # (B, E) bf16
    # Final vocab projection: M = B rows is far too small for the MXU-tiled
    # Pallas kernel, so let XLA handle it directly.
    logits = jnp.dot(last, params["out_w"],
                     preferred_element_type=jnp.float32) + params["out_b"]
    return {"output": last.astype(jnp.float32), "logits": logits}


# --------------------------------------------------------------------------
# Deterministic parameter construction (weights pre-transposed to (K,N), bf16,
# attention scale 1/sqrt(head_dim) folded into the Q projections)
# --------------------------------------------------------------------------

def make_positional_encoding(d_model, max_len=100):
    position = jnp.arange(max_len, dtype=jnp.float32)[:, None]
    div_term = jnp.exp(jnp.arange(0, d_model, 2, dtype=jnp.float32)
                       * (-math.log(10000.0) / d_model))
    pe = jnp.zeros((max_len, d_model), jnp.float32)
    pe = pe.at[:, 0::2].set(jnp.sin(position * div_term))
    pe = pe.at[:, 1::2].set(jnp.cos(position * div_term))
    return pe                                   # (max_len, d_model)


def init_params(key, vocab, E, hidden, nlayers, nhead, max_len=100):
    def u(k, shape, scale):
        return jax.random.uniform(k, shape, jnp.float32, -scale, scale)

    bf = jnp.bfloat16
    head_scale = 1.0 / math.sqrt(E // nhead)
    keys = jax.random.split(key, 2 + nlayers)
    params = {
        "word_emb": u(keys[0], (vocab, E), math.sqrt(6.0 / E)),          # kaiming-like
        "out_w": u(keys[1], (E, vocab), math.sqrt(6.0 / E)).astype(bf),  # (K, N) bf16
        "out_b": jnp.zeros((vocab,), jnp.float32),
        "pe": make_positional_encoding(E, max_len),
        "layers": [],
    }
    for i in range(nlayers):
        lk = jax.random.split(keys[2 + i], 7)
        s_e, s_h = 1.0 / math.sqrt(E), 1.0 / math.sqrt(hidden)

        qkv_w = u(lk[0], (E, 3 * E), s_e)
        qkv_w = qkv_w.at[:, :E].multiply(head_scale)        # fold 1/sqrt(d) into Q
        qkv_b = jnp.zeros((3 * E,), jnp.float32)
        qkv_b = qkv_b.at[:E].multiply(head_scale)

        ca_q_w = u(lk[2], (E, E), s_e) * head_scale          # fold 1/sqrt(d) into Q
        ca_q_b = jnp.zeros((E,), jnp.float32) * head_scale

        layer = {
            "sa_qkv_w": qkv_w.astype(bf),                "sa_qkv_b": qkv_b,
            "sa_out_w": u(lk[1], (E, E), s_e).astype(bf), "sa_out_b": jnp.zeros((E,), jnp.float32),
            "ca_q_w":   ca_q_w.astype(bf),               "ca_q_b":   ca_q_b,
            "ca_kv_w":  u(lk[3], (E, 2 * E), s_e).astype(bf), "ca_kv_b": jnp.zeros((2 * E,), jnp.float32),
            "ca_out_w": u(lk[4], (E, E), s_e).astype(bf), "ca_out_b": jnp.zeros((E,), jnp.float32),
            "ff1_w": u(lk[5], (E, hidden), s_e).astype(bf), "ff1_b": jnp.zeros((hidden,), jnp.float32),
            "ff2_w": u(lk[6], (hidden, E), s_h).astype(bf), "ff2_b": jnp.zeros((E,), jnp.float32),
            "ln1_w": jnp.ones((E,), jnp.float32), "ln1_b": jnp.zeros((E,), jnp.float32),
            "ln2_w": jnp.ones((E,), jnp.float32), "ln2_b": jnp.zeros((E,), jnp.float32),
            "ln3_w": jnp.ones((E,), jnp.float32), "ln3_b": jnp.zeros((E,), jnp.float32),
        }
        params["layers"].append(layer)
    return params


# --------------------------------------------------------------------------
# Demo
# --------------------------------------------------------------------------

if __name__ == "__main__":
    B, T, E, NHEAD, hidden, vocab, S_mem, nlayers = 2, 8, 32, 4, 64, 50, 12, 2

    root = jax.random.PRNGKey(0)
    pk, wk, mk, zk = jax.random.split(root, 4)

    params = init_params(pk, vocab, E, hidden, nlayers, NHEAD)
    words = jax.random.randint(wk, (B, T), 0, vocab, dtype=jnp.int32)
    enc_mem = jax.random.normal(mk, (B, S_mem, E), jnp.float32)
    z = jax.random.normal(zk, (B, T, E), jnp.float32)
    enc_mem_lens = jnp.array([S_mem, 7], jnp.int32)
    caps_padding_mask = jnp.arange(T)[None, :] >= jnp.array([T, 6])[:, None]   # (B, T)

    out = vae_transformer_decoder_forward(
        params, words, enc_mem, enc_mem_lens, caps_padding_mask, z, nhead=NHEAD
    )
    jax.block_until_ready(out)

    assert out["output"].shape == (B, E)
    assert out["logits"].shape == (B, vocab)
    assert not bool(jnp.any(jnp.isnan(out["output"])))
    assert not bool(jnp.any(jnp.isnan(out["logits"])))
    print("KERNEL_OK")
</pallas_src>

<mosaic_0001>
module attributes {stable_mosaic.version = 11 : i64} {
  func.func @_linear_kernel(%arg0: i32, %arg1: i32, %arg2: i32, %arg3: memref<16x32xbf16, #tpu.memory_space<vmem>>, %arg4: memref<32x96xbf16, #tpu.memory_space<vmem>>, %arg5: memref<1x96xf32, #tpu.memory_space<vmem>>, %arg6: memref<16x96xbf16, #tpu.memory_space<vmem>>, %arg7: memref<16x96xf32, #tpu.memory_space<vmem>>) attributes {dimension_semantics = [#tpu.dimension_semantics<parallel>, #tpu.dimension_semantics<parallel>, #tpu.dimension_semantics<arbitrary>], iteration_bounds = array<i64: 1, 1, 1>, scalar_prefetch = 0 : i64, scratch_operands = 1 : i64, tpu.core_type = #tpu.core_type<tc>, window_params = [{transform_indices = @transform_0, window_bounds = array<i64: 16, 32>}, {transform_indices = @transform_1, window_bounds = array<i64: 32, 96>}, {transform_indices = @transform_2, window_bounds = array<i64: 1, 96>}, {transform_indices = @transform_3, window_bounds = array<i64: 16, 96>}]} {
    %c0_i32 = arith.constant 0 : i32
    %0 = arith.cmpi eq, %arg2, %c0_i32 : i32
    %1 = arith.extui %0 : i1 to i32
    %c0_i32_0 = arith.constant 0 : i32
    %2 = arith.cmpi ne, %1, %c0_i32_0 : i32
    scf.if %2 {
      %cst_10 = arith.constant 0.000000e+00 : f32
      %12 = vector.broadcast %cst_10 : f32 to vector<16x96xf32>
      %c0_11 = arith.constant 0 : index
      %c0_12 = arith.constant 0 : index
      %13 = vector.load %arg7[%c0_11, %c0_12] : memref<16x96xf32, #tpu.memory_space<vmem>>, vector<16x96xf32>
      tpu.vector_store %arg7[%c0_11, %c0_12], %12 {strides = array<i32>} : memref<16x96xf32, #tpu.memory_space<vmem>>, vector<16x96xf32>,
    } else {
    }
    %c0 = arith.constant 0 : index
    %c0_1 = arith.constant 0 : index
    %3 = vector.load %arg7[%c0, %c0_1] : memref<16x96xf32, #tpu.memory_space<vmem>>, vector<16x96xf32>
    %c0_2 = arith.constant 0 : index
    %c0_3 = arith.constant 0 : index
    %4 = vector.load %arg3[%c0_2, %c0_3] : memref<16x32xbf16, #tpu.memory_space<vmem>>, vector<16x32xbf16>
    %c0_4 = arith.constant 0 : index
    %c0_5 = arith.constant 0 : index
    %5 = vector.load %arg4[%c0_4, %c0_5] : memref<32x96xbf16, #tpu.memory_space<vmem>>, vector<32x96xbf16>
    %cst = arith.constant dense<0.000000e+00> : vector<16x96xf32>
    %6 = tpu.matmul %4, %5, %cst {dimension_numbers = #tpu.dot_dimension_numbers<[1], [0], [0], [1], [0, 0, 1, 1], [], []>} : vector<16x32xbf16>, vector<32x96xbf16>, vector<16x96xf32> -> vector<16x96xf32>
    %7 = arith.addf %3, %6 : vector<16x96xf32>
    %c0_6 = arith.constant 0 : index
    %c0_7 = arith.constant 0 : index
    %8 = vector.load %arg7[%c0_6, %c0_7] : memref<16x96xf32, #tpu.memory_space<vmem>>, vector<16x96xf32>
    tpu.vector_store %arg7[%c0_6, %c0_7], %7 {strides = array<i32>} : memref<16x96xf32, #tpu.memory_space<vmem>>, vector<16x96xf32>,
    %c0_i32_8 = arith.constant 0 : i32
    %9 = arith.cmpi eq, %arg2, %c0_i32_8 : i32
    %10 = arith.extui %9 : i1 to i32
    %c0_i32_9 = arith.constant 0 : i32
    %11 = arith.cmpi ne, %10, %c0_i32_9 : i32
    scf.if %11 {
      %c0_10 = arith.constant 0 : index
      %c0_11 = arith.constant 0 : index
      %12 = vector.load %arg7[%c0_10, %c0_11] : memref<16x96xf32, #tpu.memory_space<vmem>>, vector<16x96xf32>
      %c0_12 = arith.constant 0 : index
      %c0_13 = arith.constant 0 : index
      %13 = vector.load %arg5[%c0_12, %c0_13] : memref<1x96xf32, #tpu.memory_space<vmem>>, vector<1x96xf32>
      %14 = vector.broadcast %13 : vector<1x96xf32> to vector<16x96xf32>
      %15 = arith.addf %12, %14 : vector<16x96xf32>
      %16 = arith.truncf %15 : vector<16x96xf32> to vector<16x96xbf16>
      %c0_14 = arith.constant 0 : index
      %c0_15 = arith.constant 0 : index
      %17 = vector.load %arg6[%c0_14, %c0_15] : memref<16x96xbf16, #tpu.memory_space<vmem>>, vector<16x96xbf16>
      tpu.vector_store %arg6[%c0_14, %c0_15], %16 {strides = array<i32>} : memref<16x96xbf16, #tpu.memory_space<vmem>>, vector<16x96xbf16>,
    } else {
    }
    return
  }
  func.func @transform_0(%arg0: i32, %arg1: i32, %arg2: i32) -> (i32, i32) {
    %c0_i32 = arith.constant 0 : i32
    return %arg0, %arg2 : i32, i32
  }
  func.func @transform_1(%arg0: i32, %arg1: i32, %arg2: i32) -> (i32, i32) {
    %c0_i32 = arith.constant 0 : i32
    return %arg2, %arg1 : i32, i32
  }
  func.func @transform_2(%arg0: i32, %arg1: i32, %arg2: i32) -> (i32, i32) {
    %c0_i32 = arith.constant 0 : i32
    %c0_i32_0 = arith.constant 0 : i32
    return %c0_i32, %arg1 : i32, i32
  }
  func.func @transform_3(%arg0: i32, %arg1: i32, %arg2: i32) -> (i32, i32) {
    %c0_i32 = arith.constant 0 : i32
    return %arg0, %arg1 : i32, i32
  }
}

</mosaic_0001>

<llo_original>
// kernel: tpu_custom_call.1
$region0: #{tpu_custom_call.1}
  #allocation0 [shape = 'u32[]', space=smem, size = 0x4, offset = 0x4, fixed_abs, tag = 'smem constant byte address 0x4 - core index']
  #allocation1 [shape = 'u32[72,128]{1,0:T(1,128)}', space=vmem, size = 0x9000, scoped, tag = 'internal scratch']
  #allocation2 [shape = 'f32[16,96]{1,0:T(8,128)}', space=vmem, size = 0x2000, scoped, tag = 'scratch operand']
  %s0 = inlined_call_operand.hbm [shape: bf16[16,32], index: 0, kind: input, shape index: {}]
  %s1 = inlined_call_operand.hbm [shape: bf16[32,96], index: 1, kind: input, shape index: {}]
  %s2 = inlined_call_operand.vmem [shape: f32[1,96], index: 2, kind: input, shape index: {}]
  %s3 = inlined_call_operand.hbm [shape: bf16[16,96], index: 3, kind: output, shape index: {}]
  %s4 = sld [smem:[#allocation0]]
  $region38: #{tpu_custom_call.1} parent=0
    _
  %s6 = ssub.s32 1, %s4
  %s7 = scalar_select 0, %s6, %s4
  $region1: #{tpu_custom_call.1} parent=0
    #allocation3 [shape = 'u8[4096]{0}', space=vmem, size = 0x1000, scoped, tag = 'input window, operand 0, single buffered']
    #allocation4 [shape = 's32[1]{0}', space=sflag, size = 0x4, scoped, tag = 'scoped memory for tpu_custom_call.1']
    #allocation5 [shape = 's32[1]{0}', space=sflag, size = 0x4, scoped, tag = 'scoped memory for tpu_custom_call.1']
    #allocation6 [shape = 'u8[8192]{0}', space=vmem, size = 0x2000, scoped, tag = 'input window, operand 1, single buffered']
    #allocation7 [shape = 's32[1]{0}', space=sflag, size = 0x4, scoped, tag = 'scoped memory for tpu_custom_call.1']
    #allocation8 [shape = 'u8[4096]{0}', space=vmem, size = 0x1000, scoped, tag = 'output window, operand 0, single buffered']
    %8 = vsyncpa [#allocation4], 0
    %9 = vsyncpa [#allocation7], 0
    %10 = vsyncpa [#allocation5], 0
    // Predicated region
    $region2: #{tpu_custom_call.1} parent=1 // pred_check
      _
    $region3: #{tpu_custom_call.1} parent=1 // pred_check_branch
      %12 = sbr.rel (0) target = $region5
    $region4: #{tpu_custom_call.1} parent=1 // pred_region
      %14 = vsyncadd [#allocation4], 0
      %s15 = sshll.u32 %s0, 4
      %s16 = int_to_ptr.hbm [resolvable:$true] %s15
      %s17 = sshll.u32 [#allocation3], 4
      %s18 = int_to_ptr.vmem [resolvable:$true] %s17
      %23 = dma.hbm_to_vmem [thread:$0]  %s16, 128, %s18, [#allocation4], 64, 64, 4
    $region5: #{tpu_custom_call.1} parent=1 // pred_fallthru
      _
    // Predicated region
    $region6: #{tpu_custom_call.1} parent=1 // pred_check
      _
    $region7: #{tpu_custom_call.1} parent=1 // pred_check_branch
      %25 = sbr.rel (0) target = $region9
    $region8: #{tpu_custom_call.1} parent=1 // pred_region
      %27 = vsyncadd [#allocation7], 0
      %s28 = sshll.u32 %s1, 4
      %s29 = int_to_ptr.hbm [resolvable:$true] %s28
      %s30 = sshll.u32 [#allocation6], 4
      %s31 = int_to_ptr.vmem [resolvable:$true] %s30
      %36 = dma.hbm_to_vmem [thread:$0]  %s29, 256, %s31, [#allocation7], 64, 64, 4
    $region9: #{tpu_custom_call.1} parent=1 // pred_fallthru
      _
    // Predicated region
    $region10: #{tpu_custom_call.1} parent=1 // pred_check
      _
    $region11: #{tpu_custom_call.1} parent=1 // pred_check_branch
      %38 = sbr.rel (0) target = $region13
    $region12: #{tpu_custom_call.1} parent=1 // pred_region
      _
    $region13: #{tpu_custom_call.1} parent=1 // pred_fallthru
      _
    // Predicated region
    $region14: #{tpu_custom_call.1} parent=1 // pred_check
      _
    $region15: #{tpu_custom_call.1} parent=1 // pred_check_branch
      %40 = sbr.rel (0) target = $region17
    $region16: #{tpu_custom_call.1} parent=1 // pred_region
      %42 = dma.done [#allocation4], 128
    $region17: #{tpu_custom_call.1} parent=1 // pred_fallthru
      _
    // Predicated region
    $region18: #{tpu_custom_call.1} parent=1 // pred_check
      _
    $region19: #{tpu_custom_call.1} parent=1 // pred_check_branch
      %44 = sbr.rel (0) target = $region21
    $region20: #{tpu_custom_call.1} parent=1 // pred_region
      %46 = dma.done [#allocation7], 256
    $region21: #{tpu_custom_call.1} parent=1 // pred_fallthru
      _
    %p48 = scmp.eq.s32.totalorder 0, 0
    // Predicated region
    $region22: #{tpu_custom_call.1} parent=1 // pred_check
      %p49 = pneg %p48
    $region23: #{tpu_custom_call.1} parent=1 // pred_check_branch
      %51 = sbr.rel (%p49) target = $region25
    $region24: #{tpu_custom_call.1} parent=1 // pred_region
      %vm52 = vcmask 785408
      %53 = vst.msk [vmem:[#allocation2] sm:$0xff] %vm52, 0.0
      %54 = vst.msk [vmem:[#allocation2 + $0x8] sm:$0xff] %vm52, 0.0
    $region25: #{tpu_custom_call.1} parent=1 // pred_fallthru
      _
    %v55 = vld [vmem:[#allocation2] sm:$0xff]
    %v56 = vld [vmem:[#allocation2 + $0x8] sm:$0xff]
    %v57 = vld [vmem:[#allocation3] sm:$0xf]
    %v58 = vld [vmem:[#allocation3 + $0x4] sm:$0xf]
    %v59 = vld [vmem:[#allocation6] sm:$0xf]
    %v60 = vld [vmem:[#allocation6 + $0x4] sm:$0xf]
    %v61 = vld [vmem:[#allocation6 + $0x8] sm:$0xf]
    %v62 = vld [vmem:[#allocation6 + $0xc] sm:$0xf]
    %v65 = vunpack.c.l.b16 %v57
    %v66 = vunpack.c.l.b16 %v58
    %v67 = vpack.c.b16 %v66, %v65
    %v72 = vunpack.c.l.b16 %v59
    %v73 = vunpack.c.l.b16 %v60
    %v74 = vunpack.c.l.b16 %v61
    %v75 = vunpack.c.l.b16 %v62
    %v76 = vpack.c.b16 %v73, %v72
    %v77 = vpack.c.b16 %v75, %v74
    %vm80 = vcmask 261120
    %v82 = vsel %vm80, %v67, 0
    %84 = vmatpush.bf16.msra.mxu0 0
    %85 = vmatpush.bf16.msra.mxu0 0
    %86 = vmatpush.bf16.msra.mxu0 0
    %87 = vmatpush.bf16.msra.mxu0 0
    %88 = vmatpush.bf16.msra.mxu0 0
    %89 = vmatpush.bf16.msra.mxu0 0
    %90 = vmatpush.bf16.msra.mxu0 %v77
    %91 = vmatpush.bf16.msra.mxu0 %v76
    %92 = vmatmul.bf16.gmra.mxu0 %v82
    %v93 = vpop.f32.mrf.mxu0
    %v94 = vadd.f32 0.0, %v93
    %v95 = vpop.f32.mrf.mxu0
    %v96 = vadd.f32 0.0, %v95
    %97 = vdwg.mxu0
    %v98 = vadd.f32 %v55, %v94
    %v99 = vadd.f32 %v56, %v96
    %vm100 = vcmask 785408
    %101 = vst.msk [vmem:[#allocation2] sm:$0xff] %vm100, %v98
    %102 = vst.msk [vmem:[#allocation2 + $0x8] sm:$0xff] %vm100, %v99
    // Predicated region
    $region26: #{tpu_custom_call.1} parent=1 // pred_check
      %p103 = pneg %p48
    $region27: #{tpu_custom_call.1} parent=1 // pred_check_branch
      %105 = sbr.rel (%p103) target = $region29
    $region28: #{tpu_custom_call.1} parent=1 // pred_region
      %v106 = vld [vmem:[#allocation2] sm:$0xff]
      %v107 = vld [vmem:[#allocation2 + $0x8] sm:$0xff]
      %v108 = vld [vmem:[%s2] sm:$0x1]
      %v110 = vperm.slane %v108, 0
      %v112 = vadd.f32 %v106, %v110
      %v113 = vadd.f32 %v107, %v110
      %v114 = vpack.c.bf16 %v112, %v112
      %v115 = vpack.c.bf16 %v113, %v113
      %vm116 = vcmask 781312
      %117 = vst.msk [vmem:[#allocation8] sm:$0xf] %vm116, %v114
      %118 = vst.msk [vmem:[#allocation8 + $0x4] sm:$0xf] %vm116, %v115
    $region29: #{tpu_custom_call.1} parent=1 // pred_fallthru
      _
    // Predicated region
    $region30: #{tpu_custom_call.1} parent=1 // pred_check
      _
    $region31: #{tpu_custom_call.1} parent=1 // pred_check_branch
      %120 = sbr.rel (0) target = $region33
    $region32: #{tpu_custom_call.1} parent=1 // pred_region
      %122 = vsyncadd [#allocation5], 0
      %s123 = sshll.u32 [#allocation8], 4
      %s124 = int_to_ptr.vmem [resolvable:$true] %s123
      %s125 = sshll.u32 %s3, 4
      %s126 = int_to_ptr.hbm [resolvable:$true] %s125
      %131 = dma.vmem_to_hbm [thread:$0]  %s124, 128, %s126, [#allocation5], 64, 64, 4
    $region33: #{tpu_custom_call.1} parent=1 // pred_fallthru
      _
    // Predicated region
    $region34: #{tpu_custom_call.1} parent=1 // pred_check
      _
    $region35: #{tpu_custom_call.1} parent=1 // pred_check_branch
      %133 = sbr.rel (0) target = $region37
    $region36: #{tpu_custom_call.1} parent=1 // pred_region
      %135 = dma.done [#allocation5], 128
    $region37: #{tpu_custom_call.1} parent=1 // pred_fallthru
      _
    %136 = vsyncpa [#allocation4], 1
    %137 = vsyncpa [#allocation7], 1
    %138 = vsyncpa [#allocation5], 1

</llo_original>
